<compile_context>
chip_gen: v7x
topology: tpu7x:2x2x1
jax: 0.10.0
libtpu: 0.0.40
codegen_flags: <defaults>
</compile_context>

<pallas_src>
import jax
import jax.numpy as jnp
from jax.experimental import pallas as pl
from jax.experimental.pallas import tpu as pltpu


def _round_up(x, m):
    return ((x + m - 1) // m) * m


def _mlp_kernel(x_ref, w1_ref, b1_ref, w2_ref, b2_ref, w3_ref, b3_ref, o_ref):
    # x_ref: (TB, D_in) bf16 tile; w1/w2 bf16 (VMEM-resident); biases/w3 f32.
    x = x_ref[...]

    # Layer 1: Linear + ReLU  (MXU bf16 x bf16 -> f32, epilogue in f32)
    h1 = jnp.dot(x, w1_ref[...], preferred_element_type=jnp.float32)
    h1 = jnp.maximum(h1 + b1_ref[...], 0.0)                      # (TB, H) f32

    # Layer 2: Linear + ReLU (activations re-cast to bf16 only for the MXU)
    h2 = jnp.dot(h1.astype(jnp.bfloat16), w2_ref[...],
                 preferred_element_type=jnp.float32)
    h2 = jnp.maximum(h2 + b2_ref[...], 0.0)                      # (TB, H) f32

    # Layer 3 (H -> 1): VPU multiply + lane reduction, no N=1 MXU matmul.
    logits = jnp.sum(h2 * w3_ref[...], axis=-1, keepdims=True)   # (TB, 1) f32
    logits = logits + b3_ref[0]                                  # scalar from SMEM

    # Numerically stable sigmoid on the EUP: exp(-|z|) + approx reciprocal.
    ez = jnp.exp(-jnp.abs(logits))
    r = pl.reciprocal(1.0 + ez, approx=True)                     # sigmoid(|z|)
    sig = jnp.where(logits >= 0.0, r, ez * r)
    o_ref[...] = sig.astype(o_ref.dtype)


def _vmem_estimate_bytes(tb, d_in, h):
    x_tile = 2 * tb * d_in * 2                       # double-buffered bf16 x tile
    out_tile = 2 * tb * 4                            # double-buffered (TB, 1) f32 out
    weights = (d_in * h + h * h) * 2 + (3 * h + 1) * 4   # resident params
    interm = 3 * tb * h * 4                          # h1/h2/product f32 live values
    return x_tile + out_tile + weights + interm


def classifier_forward(x, params, *, block_rows=512):
    """x: (B, input_dim) float; params as produced by init_params."""
    B, d_in = x.shape
    w1, b1 = params["w1"], params["b1"]
    w2, b2 = params["w2"], params["b2"]
    w3, b3 = params["w3"], params["b3"]
    h = w1.shape[1]

    # Streams: bf16 for x and the big weights; f32 for biases and the tiny w3 row.
    x_bf = x.astype(jnp.bfloat16)
    w1_bf = w1.astype(jnp.bfloat16)
    w2_bf = w2.astype(jnp.bfloat16)
    w3_row = w3.astype(jnp.float32).reshape(1, h)
    b1_row = b1.astype(jnp.float32).reshape(1, h)
    b2_row = b2.astype(jnp.float32).reshape(1, h)
    b3_s = b3.astype(jnp.float32).reshape(1)

    # Batch tile: multiple of 16 (bf16 sublane packing), clamped to padded batch.
    tb = max(16, (min(block_rows, _round_up(B, 16)) // 16) * 16)
    b_pad = _round_up(B, tb)
    if b_pad != B:
        x_bf = jnp.pad(x_bf, ((0, b_pad - B), (0, 0)))
    grid = (b_pad // tb,)

    const = lambda i: (0, 0)   # weights / biases stay resident across grid steps

    cp_kwargs = dict(dimension_semantics=("parallel",))
    est = _vmem_estimate_bytes(tb, d_in, h)
    if est > 24 * 1024 * 1024:   # only override the scoped default when needed (v7x budget)
        cp_kwargs["vmem_limit_bytes"] = int(min(2 * est, 64 * 1024 * 1024))

    out = pl.pallas_call(
        _mlp_kernel,
        out_shape=jax.ShapeDtypeStruct((b_pad, 1), jnp.float32),
        grid=grid,
        in_specs=[
            pl.BlockSpec((tb, d_in), lambda i: (i, 0)),           # x tile (pipelined)
            pl.BlockSpec((d_in, h), const),                       # w1 (resident)
            pl.BlockSpec((1, h), const),                          # b1
            pl.BlockSpec((h, h), const),                          # w2 (resident)
            pl.BlockSpec((1, h), const),                          # b2
            pl.BlockSpec((1, h), const),                          # w3 row (f32)
            pl.BlockSpec(memory_space=pltpu.MemorySpace.SMEM),    # b3 scalar
        ],
        out_specs=pl.BlockSpec((tb, 1), lambda i: (i, 0)),
        compiler_params=pltpu.CompilerParams(**cp_kwargs),
    )(x_bf, w1_bf, b1_row, w2_bf, b2_row, w3_row, b3_s)

    return out[:B] if b_pad != B else out


def init_params(key, input_dim, hidden_dim=64):
    """nn.Linear-style U(-1/sqrt(fan_in), 1/sqrt(fan_in)) init.

    Weights stored as (in_features, out_features) = PyTorch weight transposed,
    so the kernel computes y = x @ W + b directly. Biases are 1-D (out_features,).
    """
    ks = jax.random.split(key, 6)

    def linear(kw, kb, fan_in, fan_out):
        bound = 1.0 / (fan_in ** 0.5)
        w = jax.random.uniform(kw, (fan_in, fan_out), jnp.float32, -bound, bound)
        b = jax.random.uniform(kb, (fan_out,), jnp.float32, -bound, bound)
        return w, b

    w1, b1 = linear(ks[0], ks[1], input_dim, hidden_dim)
    w2, b2 = linear(ks[2], ks[3], hidden_dim, hidden_dim)
    w3, b3 = linear(ks[4], ks[5], hidden_dim, 1)
    return {"w1": w1, "b1": b1, "w2": w2, "b2": b2, "w3": w3, "b3": b3}


def reference_forward(x, params):
    """Plain-JAX reference mirroring the kernel math (bf16 streams, f32 epilogue)."""
    h = params["w1"].shape[1]
    xb = x.astype(jnp.bfloat16)
    w1b = params["w1"].astype(jnp.bfloat16)
    w2b = params["w2"].astype(jnp.bfloat16)
    h1 = jnp.maximum(
        jnp.dot(xb, w1b, preferred_element_type=jnp.float32)
        + params["b1"].reshape(1, h), 0.0)
    h2 = jnp.maximum(
        jnp.dot(h1.astype(jnp.bfloat16), w2b, preferred_element_type=jnp.float32)
        + params["b2"].reshape(1, h), 0.0)
    logits = jnp.sum(h2 * params["w3"].astype(jnp.float32).reshape(1, h),
                     axis=-1, keepdims=True)
    logits = logits + params["b3"].reshape(1, 1)
    return jax.nn.sigmoid(logits)


if __name__ == "__main__":
    B, INPUT_DIM, HIDDEN = 32, 32, 64

    key = jax.random.PRNGKey(0)
    k_x, k_p = jax.random.split(key)

    x = jax.random.normal(k_x, (B, INPUT_DIM), jnp.float32)
    params = init_params(k_p, INPUT_DIM, HIDDEN)

    # block_rows=16 exercises a multi-step, pipelined batch grid at toy size.
    out = classifier_forward(x, params, block_rows=16)
    out = jax.block_until_ready(out)

    ref = reference_forward(x, params)
    assert out.shape == (B, 1)
    assert bool(jnp.all(jnp.isfinite(out)))
    # Tolerance covers the approx-reciprocal sigmoid; structural errors would be O(0.1).
    assert jnp.allclose(out, ref, atol=5e-3, rtol=0.0), float(jnp.max(jnp.abs(out - ref)))

    print("KERNEL_OK")
</pallas_src>

<mosaic_0001>
module attributes {stable_mosaic.version = 11 : i64} {
  func.func @_mlp_kernel(%arg0: i32, %arg1: memref<16x32xbf16, #tpu.memory_space<vmem>>, %arg2: memref<32x64xbf16, #tpu.memory_space<vmem>>, %arg3: memref<1x64xf32, #tpu.memory_space<vmem>>, %arg4: memref<64x64xbf16, #tpu.memory_space<vmem>>, %arg5: memref<1x64xf32, #tpu.memory_space<vmem>>, %arg6: memref<1x64xf32, #tpu.memory_space<vmem>>, %arg7: memref<1xf32, #tpu.memory_space<smem>>, %arg8: memref<16x1xf32, #tpu.memory_space<vmem>>) attributes {dimension_semantics = [#tpu.dimension_semantics<parallel>], iteration_bounds = array<i64: 2>, scalar_prefetch = 0 : i64, scratch_operands = 0 : i64, tpu.core_type = #tpu.core_type<tc>, window_params = [{transform_indices = @transform_0, window_bounds = array<i64: 16, 32>}, {pipeline_mode = #tpu.pipeline_mode<synchronous>, transform_indices = @transform_1, window_bounds = array<i64: 32, 64>}, {pipeline_mode = #tpu.pipeline_mode<synchronous>, transform_indices = @transform_2, window_bounds = array<i64: 1, 64>}, {pipeline_mode = #tpu.pipeline_mode<synchronous>, transform_indices = @transform_3, window_bounds = array<i64: 64, 64>}, {pipeline_mode = #tpu.pipeline_mode<synchronous>, transform_indices = @transform_4, window_bounds = array<i64: 1, 64>}, {pipeline_mode = #tpu.pipeline_mode<synchronous>, transform_indices = @transform_5, window_bounds = array<i64: 1, 64>}, {transform_indices = @transform_6, window_bounds = array<i64: 1>}, {transform_indices = @transform_7, window_bounds = array<i64: 16, 1>}]} {
    %c0 = arith.constant 0 : index
    %c0_0 = arith.constant 0 : index
    %0 = vector.load %arg1[%c0, %c0_0] : memref<16x32xbf16, #tpu.memory_space<vmem>>, vector<16x32xbf16>
    %c0_1 = arith.constant 0 : index
    %c0_2 = arith.constant 0 : index
    %1 = vector.load %arg2[%c0_1, %c0_2] : memref<32x64xbf16, #tpu.memory_space<vmem>>, vector<32x64xbf16>
    %cst = arith.constant dense<0.000000e+00> : vector<16x64xf32>
    %2 = tpu.matmul %0, %1, %cst {dimension_numbers = #tpu.dot_dimension_numbers<[1], [0], [0], [1], [0, 0, 1, 1], [], []>} : vector<16x32xbf16>, vector<32x64xbf16>, vector<16x64xf32> -> vector<16x64xf32>
    %c0_3 = arith.constant 0 : index
    %c0_4 = arith.constant 0 : index
    %3 = vector.load %arg3[%c0_3, %c0_4] : memref<1x64xf32, #tpu.memory_space<vmem>>, vector<1x64xf32>
    %4 = vector.broadcast %3 : vector<1x64xf32> to vector<16x64xf32>
    %5 = arith.addf %2, %4 : vector<16x64xf32>
    %cst_5 = arith.constant 0.000000e+00 : f32
    %6 = vector.broadcast %cst_5 : f32 to vector<16x64xf32>
    %7 = arith.maximumf %5, %6 : vector<16x64xf32>
    %8 = arith.truncf %7 : vector<16x64xf32> to vector<16x64xbf16>
    %c0_6 = arith.constant 0 : index
    %c0_7 = arith.constant 0 : index
    %9 = vector.load %arg4[%c0_6, %c0_7] : memref<64x64xbf16, #tpu.memory_space<vmem>>, vector<64x64xbf16>
    %cst_8 = arith.constant dense<0.000000e+00> : vector<16x64xf32>
    %10 = tpu.matmul %8, %9, %cst_8 {dimension_numbers = #tpu.dot_dimension_numbers<[1], [0], [0], [1], [0, 0, 1, 1], [], []>} : vector<16x64xbf16>, vector<64x64xbf16>, vector<16x64xf32> -> vector<16x64xf32>
    %c0_9 = arith.constant 0 : index
    %c0_10 = arith.constant 0 : index
    %11 = vector.load %arg5[%c0_9, %c0_10] : memref<1x64xf32, #tpu.memory_space<vmem>>, vector<1x64xf32>
    %12 = vector.broadcast %11 : vector<1x64xf32> to vector<16x64xf32>
    %13 = arith.addf %10, %12 : vector<16x64xf32>
    %cst_11 = arith.constant 0.000000e+00 : f32
    %14 = vector.broadcast %cst_11 : f32 to vector<16x64xf32>
    %15 = arith.maximumf %13, %14 : vector<16x64xf32>
    %c0_12 = arith.constant 0 : index
    %c0_13 = arith.constant 0 : index
    %16 = vector.load %arg6[%c0_12, %c0_13] : memref<1x64xf32, #tpu.memory_space<vmem>>, vector<1x64xf32>
    %17 = vector.broadcast %16 : vector<1x64xf32> to vector<16x64xf32>
    %18 = arith.mulf %15, %17 : vector<16x64xf32>
    %cst_14 = arith.constant dense<0.000000e+00> : vector<16xf32>
    %19 = vector.multi_reduction <add>, %18, %cst_14 [1] : vector<16x64xf32> to vector<16xf32>
    %20 = vector.shape_cast %19 : vector<16xf32> to vector<16x1xf32>
    %c0_15 = arith.constant 0 : index
    %21 = memref.load %arg7[%c0_15] : memref<1xf32, #tpu.memory_space<smem>>
    %22 = vector.broadcast %21 : f32 to vector<16x1xf32>
    %23 = arith.addf %20, %22 : vector<16x1xf32>
    %24 = math.absf %23 : vector<16x1xf32>
    %cst_16 = arith.constant 0.000000e+00 : f32
    %25 = vector.broadcast %cst_16 : f32 to vector<16x1xf32>
    %26 = arith.subf %25, %24 : vector<16x1xf32>
    %27 = math.exp %26 : vector<16x1xf32>
    %cst_17 = arith.constant 1.000000e+00 : f32
    %28 = vector.broadcast %cst_17 : f32 to vector<16x1xf32>
    %29 = arith.addf %28, %27 : vector<16x1xf32>
    %30 = tpu.reciprocal %29 {approx = true} : vector<16x1xf32> -> vector<16x1xf32>
    %cst_18 = arith.constant 0.000000e+00 : f32
    %31 = vector.broadcast %cst_18 : f32 to vector<16x1xf32>
    %32 = arith.cmpf oge, %23, %31 : vector<16x1xf32>
    %33 = arith.mulf %27, %30 : vector<16x1xf32>
    %34 = arith.select %32, %30, %33 : vector<16x1xi1>, vector<16x1xf32>
    %c0_19 = arith.constant 0 : index
    %c0_20 = arith.constant 0 : index
    %35 = vector.load %arg8[%c0_19, %c0_20] : memref<16x1xf32, #tpu.memory_space<vmem>>, vector<16x1xf32>
    tpu.vector_store %arg8[%c0_19, %c0_20], %34 {strides = array<i32>} : memref<16x1xf32, #tpu.memory_space<vmem>>, vector<16x1xf32>,
    return
  }
  func.func @transform_0(%arg0: i32) -> (i32, i32) {
    %c0_i32 = arith.constant 0 : i32
    %c0_i32_0 = arith.constant 0 : i32
    return %arg0, %c0_i32 : i32, i32
  }
  func.func @transform_1(%arg0: i32) -> (i32, i32) {
    %c0_i32 = arith.constant 0 : i32
    %c0_i32_0 = arith.constant 0 : i32
    %c0_i32_1 = arith.constant 0 : i32
    return %c0_i32, %c0_i32_0 : i32, i32
  }
  func.func @transform_2(%arg0: i32) -> (i32, i32) {
    %c0_i32 = arith.constant 0 : i32
    %c0_i32_0 = arith.constant 0 : i32
    %c0_i32_1 = arith.constant 0 : i32
    return %c0_i32, %c0_i32_0 : i32, i32
  }
  func.func @transform_3(%arg0: i32) -> (i32, i32) {
    %c0_i32 = arith.constant 0 : i32
    %c0_i32_0 = arith.constant 0 : i32
    %c0_i32_1 = arith.constant 0 : i32
    return %c0_i32, %c0_i32_0 : i32, i32
  }
  func.func @transform_4(%arg0: i32) -> (i32, i32) {
    %c0_i32 = arith.constant 0 : i32
    %c0_i32_0 = arith.constant 0 : i32
    %c0_i32_1 = arith.constant 0 : i32
    return %c0_i32, %c0_i32_0 : i32, i32
  }
  func.func @transform_5(%arg0: i32) -> (i32, i32) {
    %c0_i32 = arith.constant 0 : i32
    %c0_i32_0 = arith.constant 0 : i32
    %c0_i32_1 = arith.constant 0 : i32
    return %c0_i32, %c0_i32_0 : i32, i32
  }
  func.func @transform_6(%arg0: i32) -> i32 {
    %c0_i32 = arith.constant 0 : i32
    %c0_i32_0 = arith.constant 0 : i32
    return %c0_i32 : i32
  }
  func.func @transform_7(%arg0: i32) -> (i32, i32) {
    %c0_i32 = arith.constant 0 : i32
    %c0_i32_0 = arith.constant 0 : i32
    return %arg0, %c0_i32 : i32, i32
  }
}

</mosaic_0001>

<llo_original>
// kernel: tpu_custom_call.1
$region0: #{tpu_custom_call.1}
  #allocation0 [shape = 'u32[]', space=smem, size = 0x4, offset = 0x4, fixed_abs, tag = 'smem constant byte address 0x4 - core index']
  #allocation1 [shape = 'u32[144,128]{1,0:T(1,128)}', space=vmem, size = 0x12000, scoped, tag = 'internal scratch']
  #allocation2 [shape = 'f32[1]{0:T(128)S(6)}', space=smem, size = 0x200, scoped, tag = 'scoped memory for tpu_custom_call.1']
  %s0 = inlined_call_operand.hbm [shape: bf16[32,32], index: 0, kind: input, shape index: {}]
  %s1 = inlined_call_operand.hbm [shape: bf16[32,64], index: 1, kind: input, shape index: {}]
  %s2 = inlined_call_operand.vmem [shape: f32[1,64], index: 2, kind: input, shape index: {}]
  %s3 = inlined_call_operand.hbm [shape: bf16[64,64], index: 3, kind: input, shape index: {}]
  %s4 = inlined_call_operand.vmem [shape: f32[1,64], index: 4, kind: input, shape index: {}]
  %s5 = inlined_call_operand.vmem [shape: f32[1,64], index: 5, kind: input, shape index: {}]
  %s6 = inlined_call_operand.<no memory space> [shape: f32[1], index: 6, kind: input, shape index: {}]
  %s7 = inlined_call_operand.vmem [shape: f32[32,1], index: 7, kind: output, shape index: {}]
  %s8 = sld [smem:[#allocation0]]
  $region73: #{tpu_custom_call.1} parent=0
    _
  %s10 = ssub.s32 1, %s8
  %s11 = scalar_select 0, %s10, %s8
  %12 = sst [smem:[#allocation2]] %s6
  $region1: #{tpu_custom_call.1} parent=0
    #allocation3 [shape = 'u8[8192]{0}', space=vmem, size = 0x2000, scoped, tag = 'input window, operand 0']
    #allocation4 [shape = 's32[2]{0}', space=sflag, size = 0x8, scoped, tag = 'scoped memory for tpu_custom_call.1']
    #allocation5 [shape = 'u8[8192]{0}', space=vmem, size = 0x2000, scoped, tag = 'input window, operand 1, single buffered']
    #allocation6 [shape = 's32[1]{0}', space=sflag, size = 0x4, scoped, tag = 'scoped memory for tpu_custom_call.1']
    #allocation7 [shape = 'u8[16384]{0}', space=vmem, size = 0x4000, scoped, tag = 'input window, operand 3, single buffered']
    %13 = vsyncpa [#allocation4], 0
    %s14 = scalar_lea.sflag [#allocation4], 1
    %15 = vsyncpa %s14, 0
    %16 = vsyncpa [#allocation6], 0
    loop: start=0, step=1, limit=4
    $region2: #{tpu_custom_call.1} parent=1 // loop_pre_header
      _
    $region3: #{tpu_custom_call.1} parent=1 // loop_header
      %s18 = sphi 0, %s22
      %p19 = scmp.ge.s32.totalorder %s18, 4
      %s28 = sphi 0, %s30
      %s31 = sphi 0, %s28
      %s32 = sphi 0, %s31
      %s48 = sphi 0, %s32
      %s52 = sphi 0, %s52
      %s54 = sphi 0, %s52
      %s55 = sphi 0, %s54
      %s69 = sphi 0, %s55
      %s73 = sphi 0, %s73
      %s75 = sphi 0, %s73
      %s76 = sphi 0, %s75
      %s90 = sphi 0, %s76
      %s94 = sphi 0, %s94
      %s96 = sphi 0, %s94
      %s97 = sphi 0, %s96
      %s111 = sphi 0, %s97
      %s115 = sphi 0, %s115
      %s117 = sphi 0, %s115
      %s118 = sphi 0, %s117
      %s132 = sphi 0, %s118
      %s136 = sphi 0, %s136
      %s138 = sphi 0, %s136
      %s139 = sphi 0, %s138
      %s153 = sphi 0, %s139
      %s157 = sphi 0, %s157
      %s159 = sphi 0, %s157
      %s160 = sphi 0, %s159
      %s174 = sphi 0, %s160
      %s180 = sphi 0, %s182
      %s183 = sphi 0, %s180
      %s184 = sphi 0, %s183
      %s200 = sphi 0, %s184
    $region4: #{tpu_custom_call.1} parent=1 // loop_header_branch
      %21 = sbr.rel (%p19) target = $region8
    $region5: #{tpu_custom_call.1} parent=1 // loop_body
      %s23 = ssub.s32 %s18, 1
      %s24 = ssub.s32 %s18, 2
      %s25 = sadd.s32 %s18, 1
      %s26 = ssub.s32 %s18, %s25
      %p27 = scmp.eq.s32.totalorder %s26, 0
      %s29 = sadd.s32 %s28, 1
      %s30 = scalar_select %p27, %s28, %s29
      %p33 = pneg %p27
      %p34 = scmp.eq.s32.totalorder %s18, 1
      %p35 = por %p33, %p34
      %p36 = scmp.ne.s32.totalorder %s28, %s31
      %p37 = scmp.eq.s32.totalorder %s18, 0
      %p38 = por %p36, %p37
      %p39 = scmp.ne.s32.totalorder %s28, %s31
      %p40 = scmp.eq.s32.totalorder %s23, 1
      %p41 = por %p39, %p40
      %p42 = scmp.ne.s32.totalorder %s31, %s32
      %p43 = scmp.eq.s32.totalorder %s23, 0
      %p44 = por %p42, %p43
      %p45 = scmp.ne.s32.totalorder %s31, %s32
      %p46 = scmp.eq.s32.totalorder %s24, 1
      %p47 = por %p45, %p46
      %p49 = scmp.ne.s32.totalorder %s32, %s48
      %p50 = scmp.eq.s32.totalorder %s24, 0
      %p51 = por %p49, %p50
      %s53 = sadd.s32 %s52, 1
      %p56 = scmp.eq.s32.totalorder %s18, 1
      %p57 = scmp.ne.s32.totalorder %s52, %s54
      %p58 = scmp.eq.s32.totalorder %s18, 0
      %p59 = por %p57, %p58
      %p60 = scmp.ne.s32.totalorder %s52, %s54
      %p61 = scmp.eq.s32.totalorder %s23, 1
      %p62 = por %p60, %p61
      %p63 = scmp.ne.s32.totalorder %s54, %s55
      %p64 = scmp.eq.s32.totalorder %s23, 0
      %p65 = por %p63, %p64
      %p66 = scmp.ne.s32.totalorder %s54, %s55
      %p67 = scmp.eq.s32.totalorder %s24, 1
      %p68 = por %p66, %p67
      %p70 = scmp.ne.s32.totalorder %s55, %s69
      %p71 = scmp.eq.s32.totalorder %s24, 0
      %p72 = por %p70, %p71
      %s74 = sadd.s32 %s73, 1
      %p77 = scmp.eq.s32.totalorder %s18, 1
      %p78 = scmp.ne.s32.totalorder %s73, %s75
      %p79 = scmp.eq.s32.totalorder %s18, 0
      %p80 = por %p78, %p79
      %p81 = scmp.ne.s32.totalorder %s73, %s75
      %p82 = scmp.eq.s32.totalorder %s23, 1
      %p83 = por %p81, %p82
      %p84 = scmp.ne.s32.totalorder %s75, %s76
      %p85 = scmp.eq.s32.totalorder %s23, 0
      %p86 = por %p84, %p85
      %p87 = scmp.ne.s32.totalorder %s75, %s76
      %p88 = scmp.eq.s32.totalorder %s24, 1
      %p89 = por %p87, %p88
      %p91 = scmp.ne.s32.totalorder %s76, %s90
      %p92 = scmp.eq.s32.totalorder %s24, 0
      %p93 = por %p91, %p92
      %s95 = sadd.s32 %s94, 1
      %p98 = scmp.eq.s32.totalorder %s18, 1
      %p99 = scmp.ne.s32.totalorder %s94, %s96
      %p100 = scmp.eq.s32.totalorder %s18, 0
      %p101 = por %p99, %p100
      %p102 = scmp.ne.s32.totalorder %s94, %s96
      %p103 = scmp.eq.s32.totalorder %s23, 1
      %p104 = por %p102, %p103
      %p105 = scmp.ne.s32.totalorder %s96, %s97
      %p106 = scmp.eq.s32.totalorder %s23, 0
      %p107 = por %p105, %p106
      %p108 = scmp.ne.s32.totalorder %s96, %s97
      %p109 = scmp.eq.s32.totalorder %s24, 1
      %p110 = por %p108, %p109
      %p112 = scmp.ne.s32.totalorder %s97, %s111
      %p113 = scmp.eq.s32.totalorder %s24, 0
      %p114 = por %p112, %p113
      %s116 = sadd.s32 %s115, 1
      %p119 = scmp.eq.s32.totalorder %s18, 1
      %p120 = scmp.ne.s32.totalorder %s115, %s117
      %p121 = scmp.eq.s32.totalorder %s18, 0
      %p122 = por %p120, %p121
      %p123 = scmp.ne.s32.totalorder %s115, %s117
      %p124 = scmp.eq.s32.totalorder %s23, 1
      %p125 = por %p123, %p124
      %p126 = scmp.ne.s32.totalorder %s117, %s118
      %p127 = scmp.eq.s32.totalorder %s23, 0
      %p128 = por %p126, %p127
      %p129 = scmp.ne.s32.totalorder %s117, %s118
      %p130 = scmp.eq.s32.totalorder %s24, 1
      %p131 = por %p129, %p130
      %p133 = scmp.ne.s32.totalorder %s118, %s132
      %p134 = scmp.eq.s32.totalorder %s24, 0
      %p135 = por %p133, %p134
      %s137 = sadd.s32 %s136, 1
      %p140 = scmp.eq.s32.totalorder %s18, 1
      %p141 = scmp.ne.s32.totalorder %s136, %s138
      %p142 = scmp.eq.s32.totalorder %s18, 0
      %p143 = por %p141, %p142
      %p144 = scmp.ne.s32.totalorder %s136, %s138
      %p145 = scmp.eq.s32.totalorder %s23, 1
      %p146 = por %p144, %p145
      %p147 = scmp.ne.s32.totalorder %s138, %s139
      %p148 = scmp.eq.s32.totalorder %s23, 0
      %p149 = por %p147, %p148
      %p150 = scmp.ne.s32.totalorder %s138, %s139
      %p151 = scmp.eq.s32.totalorder %s24, 1
      %p152 = por %p150, %p151
      %p154 = scmp.ne.s32.totalorder %s139, %s153
      %p155 = scmp.eq.s32.totalorder %s24, 0
      %p156 = por %p154, %p155
      %s158 = sadd.s32 %s157, 1
      %p161 = scmp.eq.s32.totalorder %s18, 1
      %p162 = scmp.ne.s32.totalorder %s157, %s159
      %p163 = scmp.eq.s32.totalorder %s18, 0
      %p164 = por %p162, %p163
      %p165 = scmp.ne.s32.totalorder %s157, %s159
      %p166 = scmp.eq.s32.totalorder %s23, 1
      %p167 = por %p165, %p166
      %p168 = scmp.ne.s32.totalorder %s159, %s160
      %p169 = scmp.eq.s32.totalorder %s23, 0
      %p170 = por %p168, %p169
      %p171 = scmp.ne.s32.totalorder %s159, %s160
      %p172 = scmp.eq.s32.totalorder %s24, 1
      %p173 = por %p171, %p172
      %p175 = scmp.ne.s32.totalorder %s160, %s174
      %p176 = scmp.eq.s32.totalorder %s24, 0
      %p177 = por %p175, %p176
      %s178 = ssub.s32 %s18, %s25
      %p179 = scmp.eq.s32.totalorder %s178, 0
      %s181 = sadd.s32 %s180, 1
      %s182 = scalar_select %p179, %s180, %s181
      %p185 = pneg %p179
      %p186 = scmp.eq.s32.totalorder %s18, 1
      %p187 = por %p185, %p186
      %p188 = scmp.ne.s32.totalorder %s180, %s183
      %p189 = scmp.eq.s32.totalorder %s18, 0
      %p190 = por %p188, %p189
      %p191 = scmp.ne.s32.totalorder %s180, %s183
      %p192 = scmp.eq.s32.totalorder %s23, 1
      %p193 = por %p191, %p192
      %p194 = scmp.ne.s32.totalorder %s183, %s184
      %p195 = scmp.eq.s32.totalorder %s23, 0
      %p196 = por %p194, %p195
      %p197 = scmp.ne.s32.totalorder %s183, %s184
      %p198 = scmp.eq.s32.totalorder %s24, 1
      %p199 = por %p197, %p198
      %p201 = scmp.ne.s32.totalorder %s184, %s200
      %p202 = scmp.eq.s32.totalorder %s24, 0
      %p203 = por %p201, %p202
      %p204 = scmp.le.s32.totalorder 1, %s18
      %p205 = scmp.lt.s32.totalorder %s18, 3
      %p206 = pnand %p204, %p205
      %p207 = pneg %p206
      // Predicated region
      $region9: #{tpu_custom_call.1} parent=5 // pred_check
        _
      $region10: #{tpu_custom_call.1} parent=5 // pred_check_branch
        %209 = sbr.rel (%p206) target = $region12
      $region11: #{tpu_custom_call.1} parent=5 // pred_region
        %s210 = ssub.s32 %s18, 1
        // Predicated region
        $region13: #{tpu_custom_call.1} parent=11 // pred_check
          %p211 = pneg %p65
        $region14: #{tpu_custom_call.1} parent=11 // pred_check_branch
          %213 = sbr.rel (%p211) target = $region16
        $region15: #{tpu_custom_call.1} parent=11 // pred_region
          %s215 = ssub.s32 256, 256
          %216 = vsyncadd [#allocation6], %s215
          %s217 = sshll.u32 [#allocation5], 4
          %s218 = int_to_ptr.vmem [resolvable:$true] %s217
          %223 = dma.hbm_to_vmem [thread:$0]  %s1, 256, %s218, [#allocation6], 64, 64, 4
        $region16: #{tpu_custom_call.1} parent=11 // pred_fallthru
          _
        // Predicated region
        $region17: #{tpu_custom_call.1} parent=11 // pred_check
          %p224 = pneg %p86
        $region18: #{tpu_custom_call.1} parent=11 // pred_check_branch
          %226 = sbr.rel (%p224) target = $region20
        $region19: #{tpu_custom_call.1} parent=11 // pred_region
          _
        $region20: #{tpu_custom_call.1} parent=11 // pred_fallthru
          _
        // Predicated region
        $region21: #{tpu_custom_call.1} parent=11 // pred_check
          %p227 = pneg %p107
        $region22: #{tpu_custom_call.1} parent=11 // pred_check_branch
          %229 = sbr.rel (%p227) target = $region24
        $region23: #{tpu_custom_call.1} parent=11 // pred_region
          %s231 = ssub.s32 512, 512
          %232 = vsyncadd [#allocation6], %s231
          %s233 = sshll.u32 [#allocation7], 4
          %s234 = int_to_ptr.vmem [resolvable:$true] %s233
          %239 = dma.hbm_to_vmem [thread:$0]  %s3, 512, %s234, [#allocation6], 64, 64, 4
        $region24: #{tpu_custom_call.1} parent=11 // pred_fallthru
          _
        // Predicated region
        $region25: #{tpu_custom_call.1} parent=11 // pred_check
          %p240 = pneg %p128
        $region26: #{tpu_custom_call.1} parent=11 // pred_check_branch
          %242 = sbr.rel (%p240) target = $region28
        $region27: #{tpu_custom_call.1} parent=11 // pred_region
          _
        $region28: #{tpu_custom_call.1} parent=11 // pred_fallthru
          _
        // Predicated region
        $region29: #{tpu_custom_call.1} parent=11 // pred_check
          %p243 = pneg %p149
        $region30: #{tpu_custom_call.1} parent=11 // pred_check_branch
          %245 = sbr.rel (%p243) target = $region32
        $region31: #{tpu_custom_call.1} parent=11 // pred_region
          _
        $region32: #{tpu_custom_call.1} parent=11 // pred_fallthru
          _
        // Predicated region
        $region33: #{tpu_custom_call.1} parent=11 // pred_check
          %p246 = pneg %p170
        $region34: #{tpu_custom_call.1} parent=11 // pred_check_branch
          %248 = sbr.rel (%p246) target = $region36
        $region35: #{tpu_custom_call.1} parent=11 // pred_region
          _
        $region36: #{tpu_custom_call.1} parent=11 // pred_fallthru
          _
      $region12: #{tpu_custom_call.1} parent=5 // pred_fallthru
        _
      %p249 = scmp.lt.s32.totalorder %s18, 2
      // Predicated region
      $region37: #{tpu_custom_call.1} parent=5 // pred_check
        %p250 = pneg %p249
      $region38: #{tpu_custom_call.1} parent=5 // pred_check_branch
        %252 = sbr.rel (%p250) target = $region40
      $region39: #{tpu_custom_call.1} parent=5 // pred_region
        // Predicated region
        $region41: #{tpu_custom_call.1} parent=39 // pred_check
          %p253 = pneg %p38
        $region42: #{tpu_custom_call.1} parent=39 // pred_check_branch
          %255 = sbr.rel (%p253) target = $region44
        $region43: #{tpu_custom_call.1} parent=39 // pred_region
          %s256 = sand.u32 %s28, 1
          %s257 = scalar_lea.sflag [#allocation4], %s256
          %s258 = sand.u32 %s28, 1
          %s259 = smul.addr %s258, 8
          %s260 = scalar_lea.vmem [#allocation3], %s259
          %s261 = smul.u32 2, %s18
          %s263 = ssub.s32 128, 128
          %264 = vsyncadd %s257, %s263
          %s265 = smul.addr %s261, 64
          %s266 = scalar_lea.hbm %s0, %s265
          %s267 = sshll.u32 %s260, 4
          %s268 = int_to_ptr.vmem [resolvable:$true] %s267
          %273 = dma.hbm_to_vmem [thread:$0]  %s266, 128, %s268, %s257, 64, 64, 4
        $region44: #{tpu_custom_call.1} parent=39 // pred_fallthru
          _
      $region40: #{tpu_custom_call.1} parent=5 // pred_fallthru
        _
      %p274 = scmp.le.s32.totalorder 1, %s18
      %p275 = scmp.lt.s32.totalorder %s18, 3
      %p276 = pnand %p274, %p275
      %p277 = pneg %p276
      // Predicated region
      $region45: #{tpu_custom_call.1} parent=5 // pred_check
        _
      $region46: #{tpu_custom_call.1} parent=5 // pred_check_branch
        %279 = sbr.rel (%p276) target = $region48
      $region47: #{tpu_custom_call.1} parent=5 // pred_region
        %s280 = ssub.s32 %s18, 1
        %s281 = sand.u32 %s31, 1
        %s282 = scalar_lea.sflag [#allocation4], %s281
        %s283 = sand.u32 %s31, 1
        %s284 = smul.addr %s283, 8
        %s285 = scalar_lea.vmem [#allocation3], %s284
        // Predicated region
        $region49: #{tpu_custom_call.1} parent=47 // pred_check
          %p286 = pneg %p44
        $region50: #{tpu_custom_call.1} parent=47 // pred_check_branch
          %288 = sbr.rel (%p286) target = $region52
        $region51: #{tpu_custom_call.1} parent=47 // pred_region
          %289 = dma.done %s282, 128
        $region52: #{tpu_custom_call.1} parent=47 // pred_fallthru
          _
        // Predicated region
        $region53: #{tpu_custom_call.1} parent=47 // pred_check
          %p290 = pneg %p65
        $region54: #{tpu_custom_call.1} parent=47 // pred_check_branch
          %292 = sbr.rel (%p290) target = $region56
        $region55: #{tpu_custom_call.1} parent=47 // pred_region
          %293 = dma.done [#allocation6], 256
        $region56: #{tpu_custom_call.1} parent=47 // pred_fallthru
          _
        // Predicated region
        $region57: #{tpu_custom_call.1} parent=47 // pred_check
          %p294 = pneg %p107
        $region58: #{tpu_custom_call.1} parent=47 // pred_check_branch
          %296 = sbr.rel (%p294) target = $region60
        $region59: #{tpu_custom_call.1} parent=47 // pred_region
          %297 = dma.done [#allocation6], 512
        $region60: #{tpu_custom_call.1} parent=47 // pred_fallthru
          _
        %s298 = sand.u32 %s31, 1
        %s299 = scalar_lea.sflag [#allocation4], %s298
        %s300 = sand.u32 %s31, 1
        %s301 = smul.addr %s300, 8
        %s302 = scalar_lea.vmem [#allocation3], %s301
        %p303 = pneg %p44
        %p304 = pneg %p41
        %p305 = pneg %p65
        %p306 = pneg %p62
        %p307 = pneg %p86
        %p308 = pneg %p83
        %p309 = pneg %p107
        %p310 = pneg %p104
        %p311 = pneg %p128
        %p312 = pneg %p125
        %p313 = pneg %p149
        %p314 = pneg %p146
        %p315 = pneg %p170
        %p316 = pneg %p167
        %p317 = pneg %p196
        %p318 = pneg %p193
        %s319 = smul.u32 2, %s23
        %p320 = scmp.lt.s32.totalorder %s319, 3
        %s321 = scalar_select %p320, %s319, 3
        %s322 = smul.addr %s321, 8
        %s323 = scalar_lea.vmem %s7, %s322
        %s324 = smul.u32 2, %s23
        %s325 = smul.u32 2, %s23
        %p326 = scmp.lt.s32.totalorder %s325, 3
        %s327 = scalar_select %p326, %s325, 3
        %s328 = smul.addr %s327, 8
        %s329 = scalar_lea.vmem %s7, %s328
        %s330 = smul.u32 2, %s23
        %v332 = vld [vmem:[%s285] sm:$0xf]
        %v333 = vld [vmem:[%s285 + $0x4] sm:$0xf]
        %v334 = vld [vmem:[#allocation5] sm:$0xf]
        %v335 = vld [vmem:[#allocation5 + $0x4] sm:$0xf]
        %v336 = vld [vmem:[#allocation5 + $0x8] sm:$0xf]
        %v337 = vld [vmem:[#allocation5 + $0xc] sm:$0xf]
        %v338 = vld [vmem:[%s2] sm:$0x1]
        %v340 = vlaneseq
        %v341 = vshrl.u32 %v340, 7
        %v342 = vsub.s32 0, %v341
        %v343 = vrot.slane %v338, %v342
        %v347 = vunpack.c.l.b16 %v332
        %v348 = vunpack.c.l.b16 %v333
        %v349 = vpack.c.b16 %v348, %v347
        %v354 = vunpack.c.l.b16 %v334
        %v355 = vunpack.c.l.b16 %v335
        %v356 = vunpack.c.l.b16 %v336
        %v357 = vunpack.c.l.b16 %v337
        %v358 = vpack.c.b16 %v355, %v354
        %v359 = vpack.c.b16 %v357, %v356
        %vm362 = vcmask 261120
        %v364 = vsel %vm362, %v349, 0
        %366 = vmatprep.subr.bf16.mxu0 0
        %367 = vmatpush1.bf16.msra.mxu0 %v358
        %368 = vmatprep.subr.bf16.mxu0 0
        %369 = vmatpush1.bf16.msra.mxu0 %v359
        %370 = vmatprep.subr.bf16.mxu0 0
        %371 = vmatpush1.bf16.msra.mxu0 0
        %372 = vmatprep.subr.bf16.mxu0 0
        %373 = vmatpush1.bf16.msra.mxu0 0
        %374 = vmatprep.subr.bf16.mxu0 0
        %375 = vmatpush1.bf16.msra.mxu0 0
        %376 = vmatprep.subr.bf16.mxu0 0
        %377 = vmatpush1.bf16.msra.mxu0 0
        %378 = vmatprep.subr.bf16.mxu0 0
        %379 = vmatpush1.bf16.msra.mxu0 0
        %380 = vmatprep.subr.bf16.mxu0 0
        %381 = vmatpush1.bf16.msra.mxu0 0
        %382 = vmatprep.subr.bf16.mxu0 0
        %383 = vmatpush1.bf16.msra.mxu0 0
        %384 = vmatprep.subr.bf16.mxu0 0
        %385 = vmatpush1.bf16.msra.mxu0 0
        %386 = vmatprep.subr.bf16.mxu0 0
        %387 = vmatpush1.bf16.msra.mxu0 0
        %388 = vmatprep.subr.bf16.mxu0 0
        %389 = vmatpush1.bf16.msra.mxu0 0
        %390 = vmatprep.subr.bf16.mxu0 0
        %391 = vmatpush1.bf16.msra.mxu0 0
        %392 = vmatprep.subr.bf16.mxu0 0
        %393 = vmatpush1.bf16.msra.mxu0 0
        %394 = vmatprep.subr.bf16.mxu0 0
        %395 = vmatpush1.bf16.msra.mxu0 0
        %396 = vmatprep.subr.bf16.mxu0 0
        %397 = vmatpush1.bf16.msra.mxu0 0
        %398 = vmatprep.mubr.bf16.mxu0 0
        %399 = vmatmul.mubr.bf16.gmra.mrb[0].mxu0 %v364
        %v400 = vpop.f32.mrb[0].mxu0
        %v401 = vadd.f32 %v343, %v400
        %v402 = vpop.f32.mrb[0].mxu0
        %v403 = vpop.f32.mrb[0].mxu0
        %v404 = vadd.f32 %v343, %v403
        %v405 = vpop.f32.mrb[0].mxu0
        %406 = vdwg.mxu0
        %v407 = vmax.f32 %v401, 0.0
        %v408 = vmax.f32 %v404, 0.0
        %v409 = vpack.c.bf16 %v408, %v407
        %v410 = vld [vmem:[#allocation7] sm:$0xf]
        %v411 = vld [vmem:[#allocation7 + $0x4] sm:$0xf]
        %v412 = vld [vmem:[#allocation7 + $0x8] sm:$0xf]
        %v413 = vld [vmem:[#allocation7 + $0xc] sm:$0xf]
        %v414 = vld [vmem:[#allocation7 + $0x10] sm:$0xf]
        %v415 = vld [vmem:[#allocation7 + $0x14] sm:$0xf]
        %v416 = vld [vmem:[#allocation7 + $0x18] sm:$0xf]
        %v417 = vld [vmem:[#allocation7 + $0x1c] sm:$0xf]
        %v418 = vld [vmem:[%s4] sm:$0x1]
        %v420 = vlaneseq
        %v421 = vshrl.u32 %v420, 7
        %v422 = vsub.s32 0, %v421
        %v423 = vrot.slane %v418, %v422
        %v433 = vunpack.c.l.b16 %v410
        %v434 = vunpack.c.l.b16 %v411
        %v435 = vunpack.c.l.b16 %v412
        %v436 = vunpack.c.l.b16 %v413
        %v437 = vunpack.c.l.b16 %v414
        %v438 = vunpack.c.l.b16 %v415
        %v439 = vunpack.c.l.b16 %v416
        %v440 = vunpack.c.l.b16 %v417
        %v441 = vpack.c.b16 %v434, %v433
        %v442 = vpack.c.b16 %v436, %v435
        %v443 = vpack.c.b16 %v438, %v437
        %v444 = vpack.c.b16 %v440, %v439
        %vm449 = vcmask 523264
        %v451 = vsel %vm449, %v409, 0
        %453 = vmatprep.subr.bf16.mxu0 0
        %454 = vmatpush1.bf16.msra.mxu0 %v441
        %455 = vmatprep.subr.bf16.mxu0 0
        %456 = vmatpush1.bf16.msra.mxu0 %v442
        %457 = vmatprep.subr.bf16.mxu0 0
        %458 = vmatpush1.bf16.msra.mxu0 %v443
        %459 = vmatprep.subr.bf16.mxu0 0
        %460 = vmatpush1.bf16.msra.mxu0 %v444
        %461 = vmatprep.subr.bf16.mxu0 0
        %462 = vmatpush1.bf16.msra.mxu0 0
        %463 = vmatprep.subr.bf16.mxu0 0
        %464 = vmatpush1.bf16.msra.mxu0 0
        %465 = vmatprep.subr.bf16.mxu0 0
        %466 = vmatpush1.bf16.msra.mxu0 0
        %467 = vmatprep.subr.bf16.mxu0 0
        %468 = vmatpush1.bf16.msra.mxu0 0
        %469 = vmatprep.subr.bf16.mxu0 0
        %470 = vmatpush1.bf16.msra.mxu0 0
        %471 = vmatprep.subr.bf16.mxu0 0
        %472 = vmatpush1.bf16.msra.mxu0 0
        %473 = vmatprep.subr.bf16.mxu0 0
        %474 = vmatpush1.bf16.msra.mxu0 0
        %475 = vmatprep.subr.bf16.mxu0 0
        %476 = vmatpush1.bf16.msra.mxu0 0
        %477 = vmatprep.subr.bf16.mxu0 0
        %478 = vmatpush1.bf16.msra.mxu0 0
        %479 = vmatprep.subr.bf16.mxu0 0
        %480 = vmatpush1.bf16.msra.mxu0 0
        %481 = vmatprep.subr.bf16.mxu0 0
        %482 = vmatpush1.bf16.msra.mxu0 0
        %483 = vmatprep.subr.bf16.mxu0 0
        %484 = vmatpush1.bf16.msra.mxu0 0
        %485 = vmatprep.mubr.bf16.mxu0 0
        %486 = vmatmul.mubr.bf16.gmra.mrb[0].mxu0 %v451
        %v487 = vpop.f32.mrb[0].mxu0
        %v488 = vadd.f32 %v423, %v487
        %v489 = vpop.f32.mrb[0].mxu0
        %v490 = vpop.f32.mrb[0].mxu0
        %v491 = vadd.f32 %v423, %v490
        %v492 = vpop.f32.mrb[0].mxu0
        %493 = vdwg.mxu0
        %v494 = vmax.f32 %v488, 0.0
        %v495 = vmax.f32 %v491, 0.0
        %v496 = vld [vmem:[%s5] sm:$0x1]
        %v498 = vlaneseq
        %v499 = vshrl.u32 %v498, 7
        %v500 = vsub.s32 0, %v499
        %v501 = vrot.slane %v496, %v500
        %v503 = vmul.f32 %v494, %v501
        %v504 = vmul.f32 %v495, %v501
        %v505 = vsel %vm449, %v503, 0.0
        %506 = vadd.xlane.f32.xlu0 %v505
        %v507 = vpop.xlane.xlu0 %506
        %v508 = vsel %vm449, %v504, 0.0
        %509 = vadd.xlane.f32.xlu0 %v508
        %v510 = vpop.xlane.xlu0 %509
        %s511 = sld [smem:[#allocation2]]
        %v512 = vstv %s511
        %v513 = vadd.f32 %v507, %v512
        %v514 = vadd.f32 %v510, %v512
        %v515 = vand.u32 2147483647, %v513
        %v516 = vand.u32 2147483647, %v514
        %v517 = vsub.f32 0.0, %v515
        %v518 = vsub.f32 0.0, %v516
        %v519 = vmul.f32 %v517, 1.442695
        %v520 = vpow.pop %v519
        %v521 = vmul.f32 %v518, 1.442695
        %v522 = vpow.pop %v521
        %v523 = vadd.f32 %v520, 1.0
        %v524 = vadd.f32 %v522, 1.0
        %v525 = vrcp.pop %v523
        %v526 = vrcp.pop %v524
        %vm527 = vcmp.ge.f32.partialorder %v513, 0.0
        %vm528 = vcmp.ge.f32.partialorder %v514, 0.0
        %v529 = vmul.f32 %v520, %v525
        %v530 = vmul.f32 %v522, %v526
        %v531 = vsel %vm527, %v525, %v529
        %v532 = vsel %vm528, %v526, %v530
        %vm533 = vcmask 7168
        %534 = vst.msk [vmem:[%s329] sm:$0xff] %vm533, %v531
        %535 = vst.msk [vmem:[%s329 + $0x8] sm:$0xff] %vm533, %v532
        %s536 = smul.u32 2, %s23
        %p537 = scmp.lt.s32.totalorder %s536, 3
        %s538 = scalar_select %p537, %s536, 3
        %s539 = smul.addr %s538, 8
        %s540 = scalar_lea.vmem %s7, %s539
        // Predicated region
        $region61: #{tpu_custom_call.1} parent=47 // pred_check
          %p541 = pneg %p193
        $region62: #{tpu_custom_call.1} parent=47 // pred_check_branch
          %543 = sbr.rel (%p541) target = $region64
        $region63: #{tpu_custom_call.1} parent=47 // pred_region
          %s544 = smul.u32 2, %s23
        $region64: #{tpu_custom_call.1} parent=47 // pred_fallthru
          _
      $region48: #{tpu_custom_call.1} parent=5 // pred_fallthru
        _
      %p545 = scmp.le.s32.totalorder 2, %s18
      // Predicated region
      $region65: #{tpu_custom_call.1} parent=5 // pred_check
        %p546 = pneg %p545
      $region66: #{tpu_custom_call.1} parent=5 // pred_check_branch
        %548 = sbr.rel (%p546) target = $region68
      $region67: #{tpu_custom_call.1} parent=5 // pred_region
        %s549 = ssub.s32 %s18, 2
        // Predicated region
        $region69: #{tpu_custom_call.1} parent=67 // pred_check
          %p550 = pneg %p199
        $region70: #{tpu_custom_call.1} parent=67 // pred_check_branch
          %552 = sbr.rel (%p550) target = $region72
        $region71: #{tpu_custom_call.1} parent=67 // pred_region
          %s553 = smul.u32 2, %s24
          %p554 = scmp.lt.s32.totalorder %s553, 3
          %s555 = scalar_select %p554, %s553, 3
          %s556 = smul.addr %s555, 8
          %s557 = scalar_lea.vmem %s7, %s556
        $region72: #{tpu_custom_call.1} parent=67 // pred_fallthru
          _
      $region68: #{tpu_custom_call.1} parent=5 // pred_fallthru
        _
    $region6: #{tpu_custom_call.1} parent=1 // loop_footer
      %s22 = sadd.s32 1, %s18
    $region7: #{tpu_custom_call.1} parent=1 // loop_footer_branch
      %17 = sbr.rel target = $region3
    $region8: #{tpu_custom_call.1} parent=1 // loop_exit
      _
    %558 = vsyncpa [#allocation4], 1
    %s559 = scalar_lea.sflag [#allocation4], 1
    %560 = vsyncpa %s559, 1
    %561 = vsyncpa [#allocation6], 1

</llo_original>
